<compile_context>
chip_gen: v6e
topology: v6e:2x2x1
jax: 0.10.0
libtpu: 0.0.40
codegen_flags: <defaults>
</compile_context>

<pallas_src>
import functools

import jax
import jax.numpy as jnp
from jax.experimental import pallas as pl
from jax.experimental.pallas import tpu as pltpu

MXU_LANE = 128   # pad the tiny last-layer feature dim to a full lane tile for the MXU
MAX_TB = 4096    # batch-tile cap: keeps intermediates well inside v7x's 64 MiB VMEM


def _round_up(n, m):
    return ((n + m - 1) // m) * m


def _use_bf16_elementwise():
    # bf16 VPU exists on v6e / v7x; older generations (v2-v5) would emulate it.
    try:
        kind = jax.devices()[0].device_kind.lower()
    except Exception:
        return False
    return ("v6" in kind) or ("v7" in kind)


def critic_mlp_kernel(x_ref,
                      w1_ref, b1_ref,
                      w2_ref, b2_ref,
                      w3_ref, b3_ref,
                      w4_ref, b4_ref,
                      w5_ref, b5_ref,
                      out_ref, *, act_dtype, out_w):
    """All 5 Linear layers + ReLUs fused; intermediates never leave VMEM.

    MXU inputs bf16, accumulation f32; bias-add + ReLU in `act_dtype`
    (bf16 on v6e/v7x, f32 on v5e and older).
    """
    x = x_ref[...].astype(jnp.bfloat16)   # cast in-kernel: x read from HBM once, as-is

    def layer(h, w_ref, b_ref):
        acc = jnp.dot(h, w_ref[...], preferred_element_type=jnp.float32)
        acc = acc.astype(act_dtype) + b_ref[...]
        return jnp.maximum(acc, 0).astype(jnp.bfloat16)

    h = layer(x, w1_ref, b1_ref)
    h = layer(h, w2_ref, b2_ref)
    h = layer(h, w3_ref, b3_ref)
    h = layer(h, w4_ref, b4_ref)

    # Final layer: MXU on the 128-wide padded w5, but store only the real columns.
    q = jnp.dot(h, w5_ref[...], preferred_element_type=jnp.float32) + b5_ref[...]
    out_ref[...] = q[:, :out_w].astype(out_ref.dtype)


def critic_net_forward(x, params, *, batch_tile=2048):
    """x: [B, input_dim] float32.  params: f32 dict, W stored as [in, out]."""
    B, input_dim = x.shape
    out_dim = params["w5"].shape[1]
    out_w = _round_up(out_dim, 8)           # narrow HBM output width

    act_dtype = jnp.bfloat16 if _use_bf16_elementwise() else jnp.float32

    # bf16 weights (halves the dominant HBM weight traffic); biases in act_dtype.
    w = [params[f"w{i}"].astype(jnp.bfloat16) for i in range(1, 6)]
    b = [params[f"b{i}"].astype(act_dtype).reshape(1, -1) for i in range(1, 5)]

    # Last layer: pad to 128 MXU columns (shape only — HBM output stays narrow).
    n5 = _round_up(out_dim, MXU_LANE)
    w5 = jnp.zeros((w[4].shape[0], n5), jnp.bfloat16).at[:, :out_dim].set(w[4])
    b5 = jnp.zeros((1, n5), jnp.float32).at[:, :out_dim].set(
        params["b5"].astype(jnp.float32))

    # Batch tile: multiple of 8, capped for VMEM; ragged last block handled by
    # cdiv grid + masked edge stores (no padded copy of x).
    TB = max(8, min(int(batch_tile), MAX_TB, _round_up(B, 8)))
    TB = _round_up(TB, 8)
    # Guarantee >= 2 grid blocks when possible so v7x's 2 TensorCores both work.
    if pl.cdiv(B, TB) < 2 and B > 8:
        TB = _round_up(pl.cdiv(B, 2), 8)
    num_blocks = pl.cdiv(B, TB)

    def resident(shape):
        # Full-block, constant index_map: weight/bias stays in VMEM across steps.
        return pl.BlockSpec(shape, lambda i: (0, 0))

    in_specs = [
        pl.BlockSpec((TB, input_dim), lambda i: (i, 0)),   # x: tiled over batch
        resident(w[0].shape), resident(b[0].shape),
        resident(w[1].shape), resident(b[1].shape),
        resident(w[2].shape), resident(b[2].shape),
        resident(w[3].shape), resident(b[3].shape),
        resident(w5.shape), resident(b5.shape),
    ]

    flops = 2 * B * (input_dim * 128 + 128 * 256 + 256 * 256 + 256 * 128 + 128 * n5)
    weight_bytes = 2 * (input_dim * 128 + 128 * 256 + 256 * 256 + 256 * 128 + 128 * n5)
    bytes_accessed = B * input_dim * 4 + B * out_w * 4 + weight_bytes
    cost = pl.CostEstimate(flops=flops, transcendentals=0,
                           bytes_accessed=bytes_accessed)

    kernel = functools.partial(critic_mlp_kernel, act_dtype=act_dtype, out_w=out_w)

    out = pl.pallas_call(
        kernel,
        out_shape=jax.ShapeDtypeStruct((B, out_w), jnp.float32),
        grid=(num_blocks,),
        in_specs=in_specs,
        out_specs=pl.BlockSpec((TB, out_w), lambda i: (i, 0)),
        compiler_params=pltpu.CompilerParams(
            dimension_semantics=("parallel",),      # megacore-shard the batch axis
            vmem_limit_bytes=48 * 1024 * 1024),
        cost_estimate=cost,
    )(x.astype(jnp.float32), w[0], b[0], w[1], b[1], w[2], b[2], w[3], b[3], w5, b5)

    # out is already batch-exact; only trim the (<=7) alignment columns.
    return out[:, :out_dim]


def init_params(key, input_dim, output_dim):
    """Synthetic init mirroring the PyTorch module: W ~ N(0, 0.1) stored [in, out],
    biases PyTorch-default uniform(-1/sqrt(fan_in), 1/sqrt(fan_in))."""
    dims = [(input_dim, 128), (128, 256), (256, 256), (256, 128), (128, output_dim)]
    params = {}
    keys = jax.random.split(key, 2 * len(dims))
    for i, (fan_in, fan_out) in enumerate(dims):
        wk, bk = keys[2 * i], keys[2 * i + 1]
        params[f"w{i + 1}"] = 0.1 * jax.random.normal(wk, (fan_in, fan_out), jnp.float32)
        bound = 1.0 / (fan_in ** 0.5)
        params[f"b{i + 1}"] = jax.random.uniform(bk, (fan_out,), jnp.float32,
                                                 minval=-bound, maxval=bound)
    return params


def reference_forward(x, params, act_dtype):
    """Pure-JAX reference mirroring the kernel numerics (bf16 MXU inputs,
    f32 accumulation, bias/ReLU in act_dtype)."""
    h = x.astype(jnp.bfloat16)
    for i in range(1, 5):
        wi = params[f"w{i}"].astype(jnp.bfloat16)
        bi = params[f"b{i}"].astype(act_dtype)
        acc = jnp.dot(h, wi, preferred_element_type=jnp.float32).astype(act_dtype) + bi
        h = jnp.maximum(acc, 0).astype(jnp.bfloat16)
    w5 = params["w5"].astype(jnp.bfloat16)
    b5 = params["b5"].astype(jnp.float32)
    return jnp.dot(h, w5, preferred_element_type=jnp.float32) + b5


if __name__ == "__main__":
    key = jax.random.PRNGKey(0)
    k_param, k_x1, k_x2 = jax.random.split(key, 3)

    batch, input_dim, output_dim = 8, 16, 4
    params = init_params(k_param, input_dim, output_dim)
    act_dtype = jnp.bfloat16 if _use_bf16_elementwise() else jnp.float32

    # Small-batch check (single grid step).
    x = jax.random.normal(k_x1, (batch, input_dim), jnp.float32)
    q = jax.block_until_ready(critic_net_forward(x, params))
    q_ref = reference_forward(x, params, act_dtype)
    assert q.shape == (batch, output_dim)
    assert jnp.allclose(q, q_ref, atol=2e-2, rtol=2e-2)

    # Non-multiple batch, default tile: exercises the 2-block split (v7x megacore).
    x2 = jax.random.normal(k_x2, (300, input_dim), jnp.float32)
    q2 = jax.block_until_ready(critic_net_forward(x2, params))
    q2_ref = reference_forward(x2, params, act_dtype)
    assert q2.shape == (300, output_dim)
    assert jnp.allclose(q2, q2_ref, atol=2e-2, rtol=2e-2)

    # Small explicit tile: exercises a ragged last block (3 steps, masked store).
    q3 = jax.block_until_ready(critic_net_forward(x2, params, batch_tile=128))
    assert q3.shape == (300, output_dim)
    assert jnp.allclose(q3, q2_ref, atol=2e-2, rtol=2e-2)

    print("KERNEL_OK")
</pallas_src>

<mosaic_0001>
module attributes {stable_mosaic.version = 11 : i64} {
  func.func @critic_mlp_kernel(%arg0: i32, %arg1: memref<8x16xf32, #tpu.memory_space<vmem>>, %arg2: memref<16x128xbf16, #tpu.memory_space<vmem>>, %arg3: memref<1x128xf32, #tpu.memory_space<vmem>>, %arg4: memref<128x256xbf16, #tpu.memory_space<vmem>>, %arg5: memref<1x256xf32, #tpu.memory_space<vmem>>, %arg6: memref<256x256xbf16, #tpu.memory_space<vmem>>, %arg7: memref<1x256xf32, #tpu.memory_space<vmem>>, %arg8: memref<256x128xbf16, #tpu.memory_space<vmem>>, %arg9: memref<1x128xf32, #tpu.memory_space<vmem>>, %arg10: memref<128x128xbf16, #tpu.memory_space<vmem>>, %arg11: memref<1x128xf32, #tpu.memory_space<vmem>>, %arg12: memref<8x8xf32, #tpu.memory_space<vmem>>) attributes {dimension_semantics = [#tpu.dimension_semantics<parallel>], iteration_bounds = array<i64: 1>, scalar_prefetch = 0 : i64, scratch_operands = 0 : i64, tpu.core_type = #tpu.core_type<tc>, window_params = [{transform_indices = @transform_0, window_bounds = array<i64: 8, 16>}, {pipeline_mode = #tpu.pipeline_mode<synchronous>, transform_indices = @transform_1, window_bounds = array<i64: 16, 128>}, {pipeline_mode = #tpu.pipeline_mode<synchronous>, transform_indices = @transform_2, window_bounds = array<i64: 1, 128>}, {pipeline_mode = #tpu.pipeline_mode<synchronous>, transform_indices = @transform_3, window_bounds = array<i64: 128, 256>}, {pipeline_mode = #tpu.pipeline_mode<synchronous>, transform_indices = @transform_4, window_bounds = array<i64: 1, 256>}, {pipeline_mode = #tpu.pipeline_mode<synchronous>, transform_indices = @transform_5, window_bounds = array<i64: 256, 256>}, {pipeline_mode = #tpu.pipeline_mode<synchronous>, transform_indices = @transform_6, window_bounds = array<i64: 1, 256>}, {pipeline_mode = #tpu.pipeline_mode<synchronous>, transform_indices = @transform_7, window_bounds = array<i64: 256, 128>}, {pipeline_mode = #tpu.pipeline_mode<synchronous>, transform_indices = @transform_8, window_bounds = array<i64: 1, 128>}, {pipeline_mode = #tpu.pipeline_mode<synchronous>, transform_indices = @transform_9, window_bounds = array<i64: 128, 128>}, {pipeline_mode = #tpu.pipeline_mode<synchronous>, transform_indices = @transform_10, window_bounds = array<i64: 1, 128>}, {transform_indices = @transform_11, window_bounds = array<i64: 8, 8>}]} {
    %c0 = arith.constant 0 : index
    %c0_0 = arith.constant 0 : index
    %0 = vector.load %arg1[%c0, %c0_0] : memref<8x16xf32, #tpu.memory_space<vmem>>, vector<8x16xf32>
    %1 = arith.truncf %0 : vector<8x16xf32> to vector<8x16xbf16>
    %c0_1 = arith.constant 0 : index
    %c0_2 = arith.constant 0 : index
    %2 = vector.load %arg2[%c0_1, %c0_2] : memref<16x128xbf16, #tpu.memory_space<vmem>>, vector<16x128xbf16>
    %cst = arith.constant dense<0.000000e+00> : vector<8x128xf32>
    %3 = tpu.matmul %1, %2, %cst {dimension_numbers = #tpu.dot_dimension_numbers<[1], [0], [0], [1], [0, 0, 1, 1], [], []>} : vector<8x16xbf16>, vector<16x128xbf16>, vector<8x128xf32> -> vector<8x128xf32>
    %c0_3 = arith.constant 0 : index
    %c0_4 = arith.constant 0 : index
    %4 = vector.load %arg3[%c0_3, %c0_4] : memref<1x128xf32, #tpu.memory_space<vmem>>, vector<1x128xf32>
    %5 = vector.broadcast %4 : vector<1x128xf32> to vector<8x128xf32>
    %6 = arith.addf %3, %5 : vector<8x128xf32>
    %cst_5 = arith.constant 0.000000e+00 : f32
    %7 = vector.broadcast %cst_5 : f32 to vector<8x128xf32>
    %8 = arith.maximumf %6, %7 : vector<8x128xf32>
    %9 = arith.truncf %8 : vector<8x128xf32> to vector<8x128xbf16>
    %c0_6 = arith.constant 0 : index
    %c0_7 = arith.constant 0 : index
    %10 = vector.load %arg4[%c0_6, %c0_7] : memref<128x256xbf16, #tpu.memory_space<vmem>>, vector<128x256xbf16>
    %cst_8 = arith.constant dense<0.000000e+00> : vector<8x256xf32>
    %11 = tpu.matmul %9, %10, %cst_8 {dimension_numbers = #tpu.dot_dimension_numbers<[1], [0], [0], [1], [0, 0, 1, 1], [], []>} : vector<8x128xbf16>, vector<128x256xbf16>, vector<8x256xf32> -> vector<8x256xf32>
    %c0_9 = arith.constant 0 : index
    %c0_10 = arith.constant 0 : index
    %12 = vector.load %arg5[%c0_9, %c0_10] : memref<1x256xf32, #tpu.memory_space<vmem>>, vector<1x256xf32>
    %13 = vector.broadcast %12 : vector<1x256xf32> to vector<8x256xf32>
    %14 = arith.addf %11, %13 : vector<8x256xf32>
    %cst_11 = arith.constant 0.000000e+00 : f32
    %15 = vector.broadcast %cst_11 : f32 to vector<8x256xf32>
    %16 = arith.maximumf %14, %15 : vector<8x256xf32>
    %17 = arith.truncf %16 : vector<8x256xf32> to vector<8x256xbf16>
    %c0_12 = arith.constant 0 : index
    %c0_13 = arith.constant 0 : index
    %18 = vector.load %arg6[%c0_12, %c0_13] : memref<256x256xbf16, #tpu.memory_space<vmem>>, vector<256x256xbf16>
    %cst_14 = arith.constant dense<0.000000e+00> : vector<8x256xf32>
    %19 = tpu.matmul %17, %18, %cst_14 {dimension_numbers = #tpu.dot_dimension_numbers<[1], [0], [0], [1], [0, 0, 1, 1], [], []>} : vector<8x256xbf16>, vector<256x256xbf16>, vector<8x256xf32> -> vector<8x256xf32>
    %c0_15 = arith.constant 0 : index
    %c0_16 = arith.constant 0 : index
    %20 = vector.load %arg7[%c0_15, %c0_16] : memref<1x256xf32, #tpu.memory_space<vmem>>, vector<1x256xf32>
    %21 = vector.broadcast %20 : vector<1x256xf32> to vector<8x256xf32>
    %22 = arith.addf %19, %21 : vector<8x256xf32>
    %cst_17 = arith.constant 0.000000e+00 : f32
    %23 = vector.broadcast %cst_17 : f32 to vector<8x256xf32>
    %24 = arith.maximumf %22, %23 : vector<8x256xf32>
    %25 = arith.truncf %24 : vector<8x256xf32> to vector<8x256xbf16>
    %c0_18 = arith.constant 0 : index
    %c0_19 = arith.constant 0 : index
    %26 = vector.load %arg8[%c0_18, %c0_19] : memref<256x128xbf16, #tpu.memory_space<vmem>>, vector<256x128xbf16>
    %cst_20 = arith.constant dense<0.000000e+00> : vector<8x128xf32>
    %27 = tpu.matmul %25, %26, %cst_20 {dimension_numbers = #tpu.dot_dimension_numbers<[1], [0], [0], [1], [0, 0, 1, 1], [], []>} : vector<8x256xbf16>, vector<256x128xbf16>, vector<8x128xf32> -> vector<8x128xf32>
    %c0_21 = arith.constant 0 : index
    %c0_22 = arith.constant 0 : index
    %28 = vector.load %arg9[%c0_21, %c0_22] : memref<1x128xf32, #tpu.memory_space<vmem>>, vector<1x128xf32>
    %29 = vector.broadcast %28 : vector<1x128xf32> to vector<8x128xf32>
    %30 = arith.addf %27, %29 : vector<8x128xf32>
    %cst_23 = arith.constant 0.000000e+00 : f32
    %31 = vector.broadcast %cst_23 : f32 to vector<8x128xf32>
    %32 = arith.maximumf %30, %31 : vector<8x128xf32>
    %33 = arith.truncf %32 : vector<8x128xf32> to vector<8x128xbf16>
    %c0_24 = arith.constant 0 : index
    %c0_25 = arith.constant 0 : index
    %34 = vector.load %arg10[%c0_24, %c0_25] : memref<128x128xbf16, #tpu.memory_space<vmem>>, vector<128x128xbf16>
    %cst_26 = arith.constant dense<0.000000e+00> : vector<8x128xf32>
    %35 = tpu.matmul %33, %34, %cst_26 {dimension_numbers = #tpu.dot_dimension_numbers<[1], [0], [0], [1], [0, 0, 1, 1], [], []>} : vector<8x128xbf16>, vector<128x128xbf16>, vector<8x128xf32> -> vector<8x128xf32>
    %c0_27 = arith.constant 0 : index
    %c0_28 = arith.constant 0 : index
    %36 = vector.load %arg11[%c0_27, %c0_28] : memref<1x128xf32, #tpu.memory_space<vmem>>, vector<1x128xf32>
    %37 = vector.broadcast %36 : vector<1x128xf32> to vector<8x128xf32>
    %38 = arith.addf %35, %37 : vector<8x128xf32>
    %39 = vector.extract_strided_slice %38 {offsets = [0, 0], sizes = [8, 8], strides = [1, 1]} : vector<8x128xf32> to vector<8x8xf32>
    %c0_29 = arith.constant 0 : index
    %c0_30 = arith.constant 0 : index
    %40 = vector.load %arg12[%c0_29, %c0_30] : memref<8x8xf32, #tpu.memory_space<vmem>>, vector<8x8xf32>
    tpu.vector_store %arg12[%c0_29, %c0_30], %39 {strides = array<i32>} : memref<8x8xf32, #tpu.memory_space<vmem>>, vector<8x8xf32>,
    return
  }
  func.func @transform_0(%arg0: i32) -> (i32, i32) {
    %c0_i32 = arith.constant 0 : i32
    %c0_i32_0 = arith.constant 0 : i32
    return %arg0, %c0_i32 : i32, i32
  }
  func.func @transform_1(%arg0: i32) -> (i32, i32) {
    %c0_i32 = arith.constant 0 : i32
    %c0_i32_0 = arith.constant 0 : i32
    %c0_i32_1 = arith.constant 0 : i32
    return %c0_i32, %c0_i32_0 : i32, i32
  }
  func.func @transform_2(%arg0: i32) -> (i32, i32) {
    %c0_i32 = arith.constant 0 : i32
    %c0_i32_0 = arith.constant 0 : i32
    %c0_i32_1 = arith.constant 0 : i32
    return %c0_i32, %c0_i32_0 : i32, i32
  }
  func.func @transform_3(%arg0: i32) -> (i32, i32) {
    %c0_i32 = arith.constant 0 : i32
    %c0_i32_0 = arith.constant 0 : i32
    %c0_i32_1 = arith.constant 0 : i32
    return %c0_i32, %c0_i32_0 : i32, i32
  }
  func.func @transform_4(%arg0: i32) -> (i32, i32) {
    %c0_i32 = arith.constant 0 : i32
    %c0_i32_0 = arith.constant 0 : i32
    %c0_i32_1 = arith.constant 0 : i32
    return %c0_i32, %c0_i32_0 : i32, i32
  }
  func.func @transform_5(%arg0: i32) -> (i32, i32) {
    %c0_i32 = arith.constant 0 : i32
    %c0_i32_0 = arith.constant 0 : i32
    %c0_i32_1 = arith.constant 0 : i32
    return %c0_i32, %c0_i32_0 : i32, i32
  }
  func.func @transform_6(%arg0: i32) -> (i32, i32) {
    %c0_i32 = arith.constant 0 : i32
    %c0_i32_0 = arith.constant 0 : i32
    %c0_i32_1 = arith.constant 0 : i32
    return %c0_i32, %c0_i32_0 : i32, i32
  }
  func.func @transform_7(%arg0: i32) -> (i32, i32) {
    %c0_i32 = arith.constant 0 : i32
    %c0_i32_0 = arith.constant 0 : i32
    %c0_i32_1 = arith.constant 0 : i32
    return %c0_i32, %c0_i32_0 : i32, i32
  }
  func.func @transform_8(%arg0: i32) -> (i32, i32) {
    %c0_i32 = arith.constant 0 : i32
    %c0_i32_0 = arith.constant 0 : i32
    %c0_i32_1 = arith.constant 0 : i32
    return %c0_i32, %c0_i32_0 : i32, i32
  }
  func.func @transform_9(%arg0: i32) -> (i32, i32) {
    %c0_i32 = arith.constant 0 : i32
    %c0_i32_0 = arith.constant 0 : i32
    %c0_i32_1 = arith.constant 0 : i32
    return %c0_i32, %c0_i32_0 : i32, i32
  }
  func.func @transform_10(%arg0: i32) -> (i32, i32) {
    %c0_i32 = arith.constant 0 : i32
    %c0_i32_0 = arith.constant 0 : i32
    %c0_i32_1 = arith.constant 0 : i32
    return %c0_i32, %c0_i32_0 : i32, i32
  }
  func.func @transform_11(%arg0: i32) -> (i32, i32) {
    %c0_i32 = arith.constant 0 : i32
    %c0_i32_0 = arith.constant 0 : i32
    return %arg0, %c0_i32 : i32, i32
  }
}

</mosaic_0001>

<llo_original>
// kernel: tpu_custom_call.1
$region0: #{tpu_custom_call.1}
  #allocation0 [shape = 'u32[]', space=smem, size = 0x4, offset = 0x4, fixed_abs, tag = 'smem constant byte address 0x4 - core index']
  #allocation1 [shape = 'u32[144,128]{1,0:T(1,128)}', space=vmem, size = 0x12000, scoped, tag = 'internal scratch']
  %s0 = inlined_call_operand.hbm [shape: f32[8,16], index: 0, kind: input, shape index: {}]
  %s1 = inlined_call_operand.hbm [shape: bf16[16,128], index: 1, kind: input, shape index: {}]
  %s2 = inlined_call_operand.vmem [shape: f32[1,128], index: 2, kind: input, shape index: {}]
  %s3 = inlined_call_operand.hbm [shape: bf16[128,256], index: 3, kind: input, shape index: {}]
  %s4 = inlined_call_operand.vmem [shape: f32[1,256], index: 4, kind: input, shape index: {}]
  %s5 = inlined_call_operand.hbm [shape: bf16[256,256], index: 5, kind: input, shape index: {}]
  %s6 = inlined_call_operand.vmem [shape: f32[1,256], index: 6, kind: input, shape index: {}]
  %s7 = inlined_call_operand.hbm [shape: bf16[256,128], index: 7, kind: input, shape index: {}]
  %s8 = inlined_call_operand.vmem [shape: f32[1,128], index: 8, kind: input, shape index: {}]
  %s9 = inlined_call_operand.hbm [shape: bf16[128,128], index: 9, kind: input, shape index: {}]
  %s10 = inlined_call_operand.vmem [shape: f32[1,128], index: 10, kind: input, shape index: {}]
  %s11 = inlined_call_operand.hbm [shape: f32[8,8], index: 11, kind: output, shape index: {}]
  %s12 = sld [smem:[#allocation0]]
  $region78: #{tpu_custom_call.1} parent=0
    _
  %s14 = ssub.s32 1, %s12
  %s15 = scalar_select 0, %s14, %s12
  $region1: #{tpu_custom_call.1} parent=0
    #allocation2 [shape = 'u8[4096]{0}', space=vmem, size = 0x1000, scoped, tag = 'input window, operand 0, single buffered']
    #allocation3 [shape = 's32[1]{0}', space=sflag, size = 0x4, scoped, tag = 'scoped memory for tpu_custom_call.1']
    #allocation4 [shape = 's32[1]{0}', space=sflag, size = 0x4, scoped, tag = 'scoped memory for tpu_custom_call.1']
    #allocation5 [shape = 'u8[4096]{0}', space=vmem, size = 0x1000, scoped, tag = 'input window, operand 1, single buffered']
    #allocation6 [shape = 's32[1]{0}', space=sflag, size = 0x4, scoped, tag = 'scoped memory for tpu_custom_call.1']
    #allocation7 [shape = 'u8[65536]{0}', space=vmem, size = 0x10000, scoped, tag = 'input window, operand 3, single buffered']
    #allocation8 [shape = 'u8[131072]{0}', space=vmem, size = 0x20000, scoped, tag = 'input window, operand 5, single buffered']
    #allocation9 [shape = 's32[1]{0}', space=sflag, size = 0x4, scoped, tag = 'scoped memory for tpu_custom_call.1']
    #allocation10 [shape = 'u8[65536]{0}', space=vmem, size = 0x10000, scoped, tag = 'input window, operand 7, single buffered']
    #allocation11 [shape = 'u8[32768]{0}', space=vmem, size = 0x8000, scoped, tag = 'input window, operand 9, single buffered']
    #allocation12 [shape = 's32[1]{0}', space=sflag, size = 0x4, scoped, tag = 'scoped memory for tpu_custom_call.1']
    #allocation13 [shape = 'u8[4096]{0}', space=vmem, size = 0x1000, scoped, tag = 'output window, operand 0, single buffered']
    %16 = vsyncpa [#allocation3], 0
    %17 = vsyncpa [#allocation6], 0
    %18 = vsyncpa [#allocation9], 0
    %19 = vsyncpa [#allocation12], 0
    %20 = vsyncpa [#allocation4], 0
    // Predicated region
    $region2: #{tpu_custom_call.1} parent=1 // pred_check
      _
    $region3: #{tpu_custom_call.1} parent=1 // pred_check_branch
      %22 = sbr.rel (0) target = $region5
    $region4: #{tpu_custom_call.1} parent=1 // pred_region
      %s24 = ssub.s32 128, 128
      %25 = vsyncadd [#allocation3], %s24
      %s27 = sshll.u32 [#allocation2], 4
      %s28 = int_to_ptr.vmem [resolvable:$true] %s27
      %30 = dma.hbm_to_vmem [thread:$0]  %s0, 128, %s28, [#allocation3]
    $region5: #{tpu_custom_call.1} parent=1 // pred_fallthru
      _
    // Predicated region
    $region6: #{tpu_custom_call.1} parent=1 // pred_check
      _
    $region7: #{tpu_custom_call.1} parent=1 // pred_check_branch
      %32 = sbr.rel (0) target = $region9
    $region8: #{tpu_custom_call.1} parent=1 // pred_region
      %s34 = ssub.s32 128, 128
      %35 = vsyncadd [#allocation6], %s34
      %s36 = sshll.u32 [#allocation5], 4
      %s37 = int_to_ptr.vmem [resolvable:$true] %s36
      %42 = dma.hbm_to_vmem [thread:$0]  %s1, 128, %s37, [#allocation6], 64, 64, 4
    $region9: #{tpu_custom_call.1} parent=1 // pred_fallthru
      _
    // Predicated region
    $region10: #{tpu_custom_call.1} parent=1 // pred_check
      _
    $region11: #{tpu_custom_call.1} parent=1 // pred_check_branch
      %44 = sbr.rel (0) target = $region13
    $region12: #{tpu_custom_call.1} parent=1 // pred_region
      _
    $region13: #{tpu_custom_call.1} parent=1 // pred_fallthru
      _
    // Predicated region
    $region14: #{tpu_custom_call.1} parent=1 // pred_check
      _
    $region15: #{tpu_custom_call.1} parent=1 // pred_check_branch
      %46 = sbr.rel (0) target = $region17
    $region16: #{tpu_custom_call.1} parent=1 // pred_region
      %s48 = ssub.s32 2048, 2048
      %49 = vsyncadd [#allocation6], %s48
      %s50 = sshll.u32 [#allocation7], 4
      %s51 = int_to_ptr.vmem [resolvable:$true] %s50
      %56 = dma.hbm_to_vmem [thread:$0]  %s3, 2048, %s51, [#allocation6], 128, 128, 8
    $region17: #{tpu_custom_call.1} parent=1 // pred_fallthru
      _
    // Predicated region
    $region18: #{tpu_custom_call.1} parent=1 // pred_check
      _
    $region19: #{tpu_custom_call.1} parent=1 // pred_check_branch
      %58 = sbr.rel (0) target = $region21
    $region20: #{tpu_custom_call.1} parent=1 // pred_region
      _
    $region21: #{tpu_custom_call.1} parent=1 // pred_fallthru
      _
    // Predicated region
    $region22: #{tpu_custom_call.1} parent=1 // pred_check
      _
    $region23: #{tpu_custom_call.1} parent=1 // pred_check_branch
      %60 = sbr.rel (0) target = $region25
    $region24: #{tpu_custom_call.1} parent=1 // pred_region
      %s62 = ssub.s32 4096, 4096
      %63 = vsyncadd [#allocation9], %s62
      %s64 = sshll.u32 [#allocation8], 4
      %s65 = int_to_ptr.vmem [resolvable:$true] %s64
      %70 = dma.hbm_to_vmem [thread:$0]  %s5, 4096, %s65, [#allocation9], 128, 128, 8
    $region25: #{tpu_custom_call.1} parent=1 // pred_fallthru
      _
    // Predicated region
    $region26: #{tpu_custom_call.1} parent=1 // pred_check
      _
    $region27: #{tpu_custom_call.1} parent=1 // pred_check_branch
      %72 = sbr.rel (0) target = $region29
    $region28: #{tpu_custom_call.1} parent=1 // pred_region
      _
    $region29: #{tpu_custom_call.1} parent=1 // pred_fallthru
      _
    // Predicated region
    $region30: #{tpu_custom_call.1} parent=1 // pred_check
      _
    $region31: #{tpu_custom_call.1} parent=1 // pred_check_branch
      %74 = sbr.rel (0) target = $region33
    $region32: #{tpu_custom_call.1} parent=1 // pred_region
      %s76 = ssub.s32 2048, 2048
      %77 = vsyncadd [#allocation9], %s76
      %s78 = sshll.u32 [#allocation10], 4
      %s79 = int_to_ptr.vmem [resolvable:$true] %s78
      %84 = dma.hbm_to_vmem [thread:$0]  %s7, 2048, %s79, [#allocation9], 64, 64, 4
    $region33: #{tpu_custom_call.1} parent=1 // pred_fallthru
      _
    // Predicated region
    $region34: #{tpu_custom_call.1} parent=1 // pred_check
      _
    $region35: #{tpu_custom_call.1} parent=1 // pred_check_branch
      %86 = sbr.rel (0) target = $region37
    $region36: #{tpu_custom_call.1} parent=1 // pred_region
      _
    $region37: #{tpu_custom_call.1} parent=1 // pred_fallthru
      _
    // Predicated region
    $region38: #{tpu_custom_call.1} parent=1 // pred_check
      _
    $region39: #{tpu_custom_call.1} parent=1 // pred_check_branch
      %88 = sbr.rel (0) target = $region41
    $region40: #{tpu_custom_call.1} parent=1 // pred_region
      %s90 = ssub.s32 1024, 1024
      %91 = vsyncadd [#allocation12], %s90
      %s92 = sshll.u32 [#allocation11], 4
      %s93 = int_to_ptr.vmem [resolvable:$true] %s92
      %98 = dma.hbm_to_vmem [thread:$0]  %s9, 1024, %s93, [#allocation12], 64, 64, 4
    $region41: #{tpu_custom_call.1} parent=1 // pred_fallthru
      _
    // Predicated region
    $region42: #{tpu_custom_call.1} parent=1 // pred_check
      _
    $region43: #{tpu_custom_call.1} parent=1 // pred_check_branch
      %100 = sbr.rel (0) target = $region45
    $region44: #{tpu_custom_call.1} parent=1 // pred_region
      _
    $region45: #{tpu_custom_call.1} parent=1 // pred_fallthru
      _
    // Predicated region
    $region46: #{tpu_custom_call.1} parent=1 // pred_check
      _
    $region47: #{tpu_custom_call.1} parent=1 // pred_check_branch
      %102 = sbr.rel (0) target = $region49
    $region48: #{tpu_custom_call.1} parent=1 // pred_region
      %103 = dma.done [#allocation3], 128
    $region49: #{tpu_custom_call.1} parent=1 // pred_fallthru
      _
    // Predicated region
    $region50: #{tpu_custom_call.1} parent=1 // pred_check
      _
    $region51: #{tpu_custom_call.1} parent=1 // pred_check_branch
      %105 = sbr.rel (0) target = $region53
    $region52: #{tpu_custom_call.1} parent=1 // pred_region
      %106 = dma.done [#allocation6], 128
    $region53: #{tpu_custom_call.1} parent=1 // pred_fallthru
      _
    // Predicated region
    $region54: #{tpu_custom_call.1} parent=1 // pred_check
      _
    $region55: #{tpu_custom_call.1} parent=1 // pred_check_branch
      %108 = sbr.rel (0) target = $region57
    $region56: #{tpu_custom_call.1} parent=1 // pred_region
      %109 = dma.done [#allocation6], 2048
    $region57: #{tpu_custom_call.1} parent=1 // pred_fallthru
      _
    // Predicated region
    $region58: #{tpu_custom_call.1} parent=1 // pred_check
      _
    $region59: #{tpu_custom_call.1} parent=1 // pred_check_branch
      %111 = sbr.rel (0) target = $region61
    $region60: #{tpu_custom_call.1} parent=1 // pred_region
      %112 = dma.done [#allocation9], 4096
    $region61: #{tpu_custom_call.1} parent=1 // pred_fallthru
      _
    // Predicated region
    $region62: #{tpu_custom_call.1} parent=1 // pred_check
      _
    $region63: #{tpu_custom_call.1} parent=1 // pred_check_branch
      %114 = sbr.rel (0) target = $region65
    $region64: #{tpu_custom_call.1} parent=1 // pred_region
      %115 = dma.done [#allocation9], 2048
    $region65: #{tpu_custom_call.1} parent=1 // pred_fallthru
      _
    // Predicated region
    $region66: #{tpu_custom_call.1} parent=1 // pred_check
      _
    $region67: #{tpu_custom_call.1} parent=1 // pred_check_branch
      %117 = sbr.rel (0) target = $region69
    $region68: #{tpu_custom_call.1} parent=1 // pred_region
      %118 = dma.done [#allocation12], 1024
    $region69: #{tpu_custom_call.1} parent=1 // pred_fallthru
      _
    %v120 = vld [vmem:[#allocation2] sm:$0xff]
    %v121 = vpack.c.bf16 %v120, %v120
    %v122 = vld [vmem:[#allocation5] sm:$0xf]
    %v123 = vld [vmem:[#allocation5 + $0x4] sm:$0xf]
    %v124 = vld [vmem:[%s2] sm:$0x1]
    %v126 = vlaneseq
    %v127 = vshrl.u32 %v126, 7
    %v128 = vsub.s32 0, %v127
    %v129 = vrot.slane %v124, %v128
    %v133 = vunpack.c.l.b16 %v122
    %v134 = vunpack.c.l.b16 %v123
    %v135 = vpack.c.b16 %v134, %v133
    %vm137 = vcmask 130048
    %v139 = vsel %vm137, %v121, 0
    %141 = vmatprep.subr.bf16.mxu0 0
    %142 = vmatpush1.bf16.msra.mxu0 0
    %143 = vmatprep.subr.bf16.mxu0 0
    %144 = vmatpush1.bf16.msra.mxu0 0
    %145 = vmatprep.subr.bf16.mxu0 0
    %146 = vmatpush1.bf16.msra.mxu0 0
    %147 = vmatprep.subr.bf16.mxu0 0
    %148 = vmatpush1.bf16.msra.mxu0 0
    %149 = vmatprep.subr.bf16.mxu0 0
    %150 = vmatpush1.bf16.msra.mxu0 0
    %151 = vmatprep.subr.bf16.mxu0 0
    %152 = vmatpush1.bf16.msra.mxu0 0
    %153 = vmatprep.subr.bf16.mxu0 0
    %154 = vmatpush1.bf16.msra.mxu0 0
    %155 = vmatprep.subr.bf16.mxu0 0
    %156 = vmatpush1.bf16.msra.mxu0 %v135
    %157 = vmatprep.subr.bf16.mxu0 0
    %158 = vmatpush2.bf16.msra.mxu0 0
    %159 = vmatprep.subr.bf16.mxu0 0
    %160 = vmatpush2.bf16.msra.mxu0 0
    %161 = vmatprep.subr.bf16.mxu0 0
    %162 = vmatpush2.bf16.msra.mxu0 0
    %163 = vmatprep.subr.bf16.mxu0 0
    %164 = vmatpush2.bf16.msra.mxu0 0
    %165 = vmatprep.subr.bf16.mxu0 0
    %166 = vmatpush2.bf16.msra.mxu0 0
    %167 = vmatprep.subr.bf16.mxu0 0
    %168 = vmatpush2.bf16.msra.mxu0 0
    %169 = vmatprep.subr.bf16.mxu0 0
    %170 = vmatpush2.bf16.msra.mxu0 0
    %171 = vmatprep.subr.bf16.mxu0 0
    %172 = vmatpush2.bf16.msra.mxu0 0
    %173 = vmatprep.mubr.bf16.mxu0 0
    %174 = vmatmul.mubr.bf16.gmra.mxu0 %v139
    %v175 = vpop.f32.mrf.mxu0
    %v176 = vadd.f32 %v129, %v175
    %v177 = vpop.f32.mrf.mxu0
    %v178 = vpop.f32.mrf.mxu0
    %v179 = vpop.f32.mrf.mxu0
    %180 = vdwg.mxu0
    %v181 = vmax.f32 %v176, 0.0
    %v182 = vpack.c.bf16 %v181, %v181
    %v183 = vld [vmem:[#allocation7] sm:$0xff]
    %v184 = vld [vmem:[#allocation7 + $0x8] sm:$0xff]
    %v185 = vld [vmem:[#allocation7 + $0x10] sm:$0xff]
    %v186 = vld [vmem:[#allocation7 + $0x18] sm:$0xff]
    %v187 = vld [vmem:[#allocation7 + $0x20] sm:$0xff]
    %v188 = vld [vmem:[#allocation7 + $0x28] sm:$0xff]
    %v189 = vld [vmem:[#allocation7 + $0x30] sm:$0xff]
    %v190 = vld [vmem:[#allocation7 + $0x38] sm:$0xff]
    %v191 = vld [vmem:[#allocation7 + $0x40] sm:$0xff]
    %v192 = vld [vmem:[#allocation7 + $0x48] sm:$0xff]
    %v193 = vld [vmem:[#allocation7 + $0x50] sm:$0xff]
    %v194 = vld [vmem:[#allocation7 + $0x58] sm:$0xff]
    %v195 = vld [vmem:[#allocation7 + $0x60] sm:$0xff]
    %v196 = vld [vmem:[#allocation7 + $0x68] sm:$0xff]
    %v197 = vld [vmem:[#allocation7 + $0x70] sm:$0xff]
    %v198 = vld [vmem:[#allocation7 + $0x78] sm:$0xff]
    %v199 = vld [vmem:[%s4] sm:$0x3]
    %v201 = vlaneseq
    %v202 = vshrl.u32 %v201, 7
    %v203 = vsub.s32 0, %v202
    %v204 = vrot.slane %v199, %v203
    %v205 = vlaneseq
    %v206 = vshrl.u32 %v205, 7
    %v207 = vsub.s32 1, %v206
    %v208 = vrot.slane %v199, %v207
    %v227 = vunpack.c.l.b16 %v183
    %v228 = vunpack.c.h.b16 %v183
    %v229 = vunpack.c.l.b16 %v184
    %v230 = vunpack.c.h.b16 %v184
    %v231 = vunpack.c.l.b16 %v185
    %v232 = vunpack.c.h.b16 %v185
    %v233 = vunpack.c.l.b16 %v186
    %v234 = vunpack.c.h.b16 %v186
    %v235 = vunpack.c.l.b16 %v187
    %v236 = vunpack.c.h.b16 %v187
    %v237 = vunpack.c.l.b16 %v188
    %v238 = vunpack.c.h.b16 %v188
    %v239 = vunpack.c.l.b16 %v189
    %v240 = vunpack.c.h.b16 %v189
    %v241 = vunpack.c.l.b16 %v190
    %v242 = vunpack.c.h.b16 %v190
    %v243 = vunpack.c.l.b16 %v191
    %v244 = vunpack.c.h.b16 %v191
    %v245 = vunpack.c.l.b16 %v192
    %v246 = vunpack.c.h.b16 %v192
    %v247 = vunpack.c.l.b16 %v193
    %v248 = vunpack.c.h.b16 %v193
    %v249 = vunpack.c.l.b16 %v194
    %v250 = vunpack.c.h.b16 %v194
    %v251 = vunpack.c.l.b16 %v195
    %v252 = vunpack.c.h.b16 %v195
    %v253 = vunpack.c.l.b16 %v196
    %v254 = vunpack.c.h.b16 %v196
    %v255 = vunpack.c.l.b16 %v197
    %v256 = vunpack.c.h.b16 %v197
    %v257 = vunpack.c.l.b16 %v198
    %v258 = vunpack.c.h.b16 %v198
    %v259 = vpack.c.b16 %v229, %v227
    %v260 = vpack.c.b16 %v230, %v228
    %v261 = vpack.c.b16 %v233, %v231
    %v262 = vpack.c.b16 %v234, %v232
    %v263 = vpack.c.b16 %v237, %v235
    %v264 = vpack.c.b16 %v238, %v236
    %v265 = vpack.c.b16 %v241, %v239
    %v266 = vpack.c.b16 %v242, %v240
    %v267 = vpack.c.b16 %v245, %v243
    %v268 = vpack.c.b16 %v246, %v244
    %v269 = vpack.c.b16 %v249, %v247
    %v270 = vpack.c.b16 %v250, %v248
    %v271 = vpack.c.b16 %v253, %v251
    %v272 = vpack.c.b16 %v254, %v252
    %v273 = vpack.c.b16 %v257, %v255
    %v274 = vpack.c.b16 %v258, %v256
    %291 = vmatprep.subr.bf16.mxu0 %v274
    %292 = vmatpush1.bf16.msra.mxu0 %v273
    %293 = vmatprep.subr.bf16.mxu0 %v272
    %294 = vmatpush1.bf16.msra.mxu0 %v271
    %295 = vmatprep.subr.bf16.mxu0 %v270
    %296 = vmatpush1.bf16.msra.mxu0 %v269
    %297 = vmatprep.subr.bf16.mxu0 %v268
    %298 = vmatpush1.bf16.msra.mxu0 %v267
    %299 = vmatprep.subr.bf16.mxu0 %v266
    %300 = vmatpush1.bf16.msra.mxu0 %v265
    %301 = vmatprep.subr.bf16.mxu0 %v264
    %302 = vmatpush1.bf16.msra.mxu0 %v263
    %303 = vmatprep.subr.bf16.mxu0 %v262
    %304 = vmatpush1.bf16.msra.mxu0 %v261
    %305 = vmatprep.subr.bf16.mxu0 %v260
    %306 = vmatpush1.bf16.msra.mxu0 %v259
    %307 = vmatprep.subr.bf16.mxu0 0
    %308 = vmatpush2.bf16.msra.mxu0 0
    %309 = vmatprep.subr.bf16.mxu0 0
    %310 = vmatpush2.bf16.msra.mxu0 0
    %311 = vmatprep.subr.bf16.mxu0 0
    %312 = vmatpush2.bf16.msra.mxu0 0
    %313 = vmatprep.subr.bf16.mxu0 0
    %314 = vmatpush2.bf16.msra.mxu0 0
    %315 = vmatprep.subr.bf16.mxu0 0
    %316 = vmatpush2.bf16.msra.mxu0 0
    %317 = vmatprep.subr.bf16.mxu0 0
    %318 = vmatpush2.bf16.msra.mxu0 0
    %319 = vmatprep.subr.bf16.mxu0 0
    %320 = vmatpush2.bf16.msra.mxu0 0
    %321 = vmatprep.subr.bf16.mxu0 0
    %322 = vmatpush2.bf16.msra.mxu0 0
    %323 = vmatprep.mubr.bf16.mxu0 0
    %324 = vmatmul.mubr.bf16.gmra.mxu0 %v182
    %v325 = vpop.f32.mrf.mxu0
    %v326 = vadd.f32 %v204, %v325
    %v327 = vpop.f32.mrf.mxu0
    %v328 = vadd.f32 %v208, %v327
    %v329 = vpop.f32.mrf.mxu0
    %v330 = vpop.f32.mrf.mxu0
    %331 = vdwg.mxu0
    %v332 = vmax.f32 %v326, 0.0
    %v333 = vmax.f32 %v328, 0.0
    %v334 = vpack.c.bf16 %v332, %v332
    %v335 = vpack.c.bf16 %v333, %v333
    %v336 = vld [vmem:[#allocation8] sm:$0xff]
    %v337 = vld [vmem:[#allocation8 + $0x8] sm:$0xff]
    %v338 = vld [vmem:[#allocation8 + $0x10] sm:$0xff]
    %v339 = vld [vmem:[#allocation8 + $0x18] sm:$0xff]
    %v340 = vld [vmem:[#allocation8 + $0x20] sm:$0xff]
    %v341 = vld [vmem:[#allocation8 + $0x28] sm:$0xff]
    %v342 = vld [vmem:[#allocation8 + $0x30] sm:$0xff]
    %v343 = vld [vmem:[#allocation8 + $0x38] sm:$0xff]
    %v344 = vld [vmem:[#allocation8 + $0x40] sm:$0xff]
    %v345 = vld [vmem:[#allocation8 + $0x48] sm:$0xff]
    %v346 = vld [vmem:[#allocation8 + $0x50] sm:$0xff]
    %v347 = vld [vmem:[#allocation8 + $0x58] sm:$0xff]
    %v348 = vld [vmem:[#allocation8 + $0x60] sm:$0xff]
    %v349 = vld [vmem:[#allocation8 + $0x68] sm:$0xff]
    %v350 = vld [vmem:[#allocation8 + $0x70] sm:$0xff]
    %v351 = vld [vmem:[#allocation8 + $0x78] sm:$0xff]
    %v352 = vld [vmem:[#allocation8 + $0x80] sm:$0xff]
    %v353 = vld [vmem:[#allocation8 + $0x88] sm:$0xff]
    %v354 = vld [vmem:[#allocation8 + $0x90] sm:$0xff]
    %v355 = vld [vmem:[#allocation8 + $0x98] sm:$0xff]
    %v356 = vld [vmem:[#allocation8 + $0xa0] sm:$0xff]
    %v357 = vld [vmem:[#allocation8 + $0xa8] sm:$0xff]
    %v358 = vld [vmem:[#allocation8 + $0xb0] sm:$0xff]
    %v359 = vld [vmem:[#allocation8 + $0xb8] sm:$0xff]
    %v360 = vld [vmem:[#allocation8 + $0xc0] sm:$0xff]
    %v361 = vld [vmem:[#allocation8 + $0xc8] sm:$0xff]
    %v362 = vld [vmem:[#allocation8 + $0xd0] sm:$0xff]
    %v363 = vld [vmem:[#allocation8 + $0xd8] sm:$0xff]
    %v364 = vld [vmem:[#allocation8 + $0xe0] sm:$0xff]
    %v365 = vld [vmem:[#allocation8 + $0xe8] sm:$0xff]
    %v366 = vld [vmem:[#allocation8 + $0xf0] sm:$0xff]
    %v367 = vld [vmem:[#allocation8 + $0xf8] sm:$0xff]
    %v368 = vld [vmem:[%s6] sm:$0x3]
    %v370 = vlaneseq
    %v371 = vshrl.u32 %v370, 7
    %v372 = vsub.s32 0, %v371
    %v373 = vrot.slane %v368, %v372
    %v374 = vlaneseq
    %v375 = vshrl.u32 %v374, 7
    %v376 = vsub.s32 1, %v375
    %v377 = vrot.slane %v368, %v376
    %v412 = vunpack.c.l.b16 %v336
    %v413 = vunpack.c.h.b16 %v336
    %v414 = vunpack.c.l.b16 %v337
    %v415 = vunpack.c.h.b16 %v337
    %v416 = vunpack.c.l.b16 %v338
    %v417 = vunpack.c.h.b16 %v338
    %v418 = vunpack.c.l.b16 %v339
    %v419 = vunpack.c.h.b16 %v339
    %v420 = vunpack.c.l.b16 %v340
    %v421 = vunpack.c.h.b16 %v340
    %v422 = vunpack.c.l.b16 %v341
    %v423 = vunpack.c.h.b16 %v341
    %v424 = vunpack.c.l.b16 %v342
    %v425 = vunpack.c.h.b16 %v342
    %v426 = vunpack.c.l.b16 %v343
    %v427 = vunpack.c.h.b16 %v343
    %v428 = vunpack.c.l.b16 %v344
    %v429 = vunpack.c.h.b16 %v344
    %v430 = vunpack.c.l.b16 %v345
    %v431 = vunpack.c.h.b16 %v345
    %v432 = vunpack.c.l.b16 %v346
    %v433 = vunpack.c.h.b16 %v346
    %v434 = vunpack.c.l.b16 %v347
    %v435 = vunpack.c.h.b16 %v347
    %v436 = vunpack.c.l.b16 %v348
    %v437 = vunpack.c.h.b16 %v348
    %v438 = vunpack.c.l.b16 %v349
    %v439 = vunpack.c.h.b16 %v349
    %v440 = vunpack.c.l.b16 %v350
    %v441 = vunpack.c.h.b16 %v350
    %v442 = vunpack.c.l.b16 %v351
    %v443 = vunpack.c.h.b16 %v351
    %v444 = vunpack.c.l.b16 %v352
    %v445 = vunpack.c.h.b16 %v352
    %v446 = vunpack.c.l.b16 %v353
    %v447 = vunpack.c.h.b16 %v353
    %v448 = vunpack.c.l.b16 %v354
    %v449 = vunpack.c.h.b16 %v354
    %v450 = vunpack.c.l.b16 %v355
    %v451 = vunpack.c.h.b16 %v355
    %v452 = vunpack.c.l.b16 %v356
    %v453 = vunpack.c.h.b16 %v356
    %v454 = vunpack.c.l.b16 %v357
    %v455 = vunpack.c.h.b16 %v357
    %v456 = vunpack.c.l.b16 %v358
    %v457 = vunpack.c.h.b16 %v358
    %v458 = vunpack.c.l.b16 %v359
    %v459 = vunpack.c.h.b16 %v359
    %v460 = vunpack.c.l.b16 %v360
    %v461 = vunpack.c.h.b16 %v360
    %v462 = vunpack.c.l.b16 %v361
    %v463 = vunpack.c.h.b16 %v361
    %v464 = vunpack.c.l.b16 %v362
    %v465 = vunpack.c.h.b16 %v362
    %v466 = vunpack.c.l.b16 %v363
    %v467 = vunpack.c.h.b16 %v363
    %v468 = vunpack.c.l.b16 %v364
    %v469 = vunpack.c.h.b16 %v364
    %v470 = vunpack.c.l.b16 %v365
    %v471 = vunpack.c.h.b16 %v365
    %v472 = vunpack.c.l.b16 %v366
    %v473 = vunpack.c.h.b16 %v366
    %v474 = vunpack.c.l.b16 %v367
    %v475 = vunpack.c.h.b16 %v367
    %v476 = vpack.c.b16 %v414, %v412
    %v477 = vpack.c.b16 %v415, %v413
    %v478 = vpack.c.b16 %v418, %v416
    %v479 = vpack.c.b16 %v419, %v417
    %v480 = vpack.c.b16 %v422, %v420
    %v481 = vpack.c.b16 %v423, %v421
    %v482 = vpack.c.b16 %v426, %v424
    %v483 = vpack.c.b16 %v427, %v425
    %v484 = vpack.c.b16 %v430, %v428
    %v485 = vpack.c.b16 %v431, %v429
    %v486 = vpack.c.b16 %v434, %v432
    %v487 = vpack.c.b16 %v435, %v433
    %v488 = vpack.c.b16 %v438, %v436
    %v489 = vpack.c.b16 %v439, %v437
    %v490 = vpack.c.b16 %v442, %v440
    %v491 = vpack.c.b16 %v443, %v441
    %v492 = vpack.c.b16 %v446, %v444
    %v493 = vpack.c.b16 %v447, %v445
    %v494 = vpack.c.b16 %v450, %v448
    %v495 = vpack.c.b16 %v451, %v449
    %v496 = vpack.c.b16 %v454, %v452
    %v497 = vpack.c.b16 %v455, %v453
    %v498 = vpack.c.b16 %v458, %v456
    %v499 = vpack.c.b16 %v459, %v457
    %v500 = vpack.c.b16 %v462, %v460
    %v501 = vpack.c.b16 %v463, %v461
    %v502 = vpack.c.b16 %v466, %v464
    %v503 = vpack.c.b16 %v467, %v465
    %v504 = vpack.c.b16 %v470, %v468
    %v505 = vpack.c.b16 %v471, %v469
    %v506 = vpack.c.b16 %v474, %v472
    %v507 = vpack.c.b16 %v475, %v473
    %540 = vmatprep.subr.bf16.mxu0 %v491
    %541 = vmatpush1.bf16.msra.mxu0 %v490
    %542 = vmatprep.subr.bf16.mxu0 %v489
    %543 = vmatpush1.bf16.msra.mxu0 %v488
    %544 = vmatprep.subr.bf16.mxu0 %v487
    %545 = vmatpush1.bf16.msra.mxu0 %v486
    %546 = vmatprep.subr.bf16.mxu0 %v485
    %547 = vmatpush1.bf16.msra.mxu0 %v484
    %548 = vmatprep.subr.bf16.mxu0 %v483
    %549 = vmatpush1.bf16.msra.mxu0 %v482
    %550 = vmatprep.subr.bf16.mxu0 %v481
    %551 = vmatpush1.bf16.msra.mxu0 %v480
    %552 = vmatprep.subr.bf16.mxu0 %v479
    %553 = vmatpush1.bf16.msra.mxu0 %v478
    %554 = vmatprep.subr.bf16.mxu0 %v477
    %555 = vmatpush1.bf16.msra.mxu0 %v476
    %556 = vmatprep.subr.bf16.mxu0 %v507
    %557 = vmatpush2.bf16.msra.mxu0 %v506
    %558 = vmatprep.subr.bf16.mxu0 %v505
    %559 = vmatpush2.bf16.msra.mxu0 %v504
    %560 = vmatprep.subr.bf16.mxu0 %v503
    %561 = vmatpush2.bf16.msra.mxu0 %v502
    %562 = vmatprep.subr.bf16.mxu0 %v501
    %563 = vmatpush2.bf16.msra.mxu0 %v500
    %564 = vmatprep.subr.bf16.mxu0 %v499
    %565 = vmatpush2.bf16.msra.mxu0 %v498
    %566 = vmatprep.subr.bf16.mxu0 %v497
    %567 = vmatpush2.bf16.msra.mxu0 %v496
    %568 = vmatprep.subr.bf16.mxu0 %v495
    %569 = vmatpush2.bf16.msra.mxu0 %v494
    %570 = vmatprep.subr.bf16.mxu0 %v493
    %571 = vmatpush2.bf16.msra.mxu0 %v492
    %572 = vmatprep.mubr.bf16.mxu0 %v335
    %573 = vmatmul.mubr.bf16.gmra.mxu0 %v334
    %v574 = vpop.f32.mrf.mxu0
    %v575 = vadd.f32 %v373, %v574
    %v576 = vpop.f32.mrf.mxu0
    %v577 = vadd.f32 %v377, %v576
    %v578 = vpop.f32.mrf.mxu0
    %v579 = vpop.f32.mrf.mxu0
    %580 = vdwg.mxu0
    %v581 = vmax.f32 %v575, 0.0
    %v582 = vmax.f32 %v577, 0.0
    %v583 = vpack.c.bf16 %v581, %v581
    %v584 = vpack.c.bf16 %v582, %v582
    %v585 = vld [vmem:[#allocation10] sm:$0xf]
    %v586 = vld [vmem:[#allocation10 + $0x4] sm:$0xf]
    %v587 = vld [vmem:[#allocation10 + $0x8] sm:$0xf]
    %v588 = vld [vmem:[#allocation10 + $0xc] sm:$0xf]
    %v589 = vld [vmem:[#allocation10 + $0x10] sm:$0xf]
    %v590 = vld [vmem:[#allocation10 + $0x14] sm:$0xf]
    %v591 = vld [vmem:[#allocation10 + $0x18] sm:$0xf]
    %v592 = vld [vmem:[#allocation10 + $0x1c] sm:$0xf]
    %v593 = vld [vmem:[#allocation10 + $0x20] sm:$0xf]
    %v594 = vld [vmem:[#allocation10 + $0x24] sm:$0xf]
    %v595 = vld [vmem:[#allocation10 + $0x28] sm:$0xf]
    %v596 = vld [vmem:[#allocation10 + $0x2c] sm:$0xf]
    %v597 = vld [vmem:[#allocation10 + $0x30] sm:$0xf]
    %v598 = vld [vmem:[#allocation10 + $0x34] sm:$0xf]
    %v599 = vld [vmem:[#allocation10 + $0x38] sm:$0xf]
    %v600 = vld [vmem:[#allocation10 + $0x3c] sm:$0xf]
    %v601 = vld [vmem:[#allocation10 + $0x40] sm:$0xf]
    %v602 = vld [vmem:[#allocation10 + $0x44] sm:$0xf]
    %v603 = vld [vmem:[#allocation10 + $0x48] sm:$0xf]
    %v604 = vld [vmem:[#allocation10 + $0x4c] sm:$0xf]
    %v605 = vld [vmem:[#allocation10 + $0x50] sm:$0xf]
    %v606 = vld [vmem:[#allocation10 + $0x54] sm:$0xf]
    %v607 = vld [vmem:[#allocation10 + $0x58] sm:$0xf]
    %v608 = vld [vmem:[#allocation10 + $0x5c] sm:$0xf]
    %v609 = vld [vmem:[#allocation10 + $0x60] sm:$0xf]
    %v610 = vld [vmem:[#allocation10 + $0x64] sm:$0xf]
    %v611 = vld [vmem:[#allocation10 + $0x68] sm:$0xf]
    %v612 = vld [vmem:[#allocation10 + $0x6c] sm:$0xf]
    %v613 = vld [vmem:[#allocation10 + $0x70] sm:$0xf]
    %v614 = vld [vmem:[#allocation10 + $0x74] sm:$0xf]
    %v615 = vld [vmem:[#allocation10 + $0x78] sm:$0xf]
    %v616 = vld [vmem:[#allocation10 + $0x7c] sm:$0xf]
    %v617 = vld [vmem:[%s8] sm:$0x1]
    %v619 = vlaneseq
    %v620 = vshrl.u32 %v619, 7
    %v621 = vsub.s32 0, %v620
    %v622 = vrot.slane %v617, %v621
    %v656 = vunpack.c.l.b16 %v585
    %v657 = vunpack.c.l.b16 %v586
    %v658 = vunpack.c.l.b16 %v587
    %v659 = vunpack.c.l.b16 %v588
    %v660 = vunpack.c.l.b16 %v589
    %v661 = vunpack.c.l.b16 %v590
    %v662 = vunpack.c.l.b16 %v591
    %v663 = vunpack.c.l.b16 %v592
    %v664 = vunpack.c.l.b16 %v593
    %v665 = vunpack.c.l.b16 %v594
    %v666 = vunpack.c.l.b16 %v595
    %v667 = vunpack.c.l.b16 %v596
    %v668 = vunpack.c.l.b16 %v597
    %v669 = vunpack.c.l.b16 %v598
    %v670 = vunpack.c.l.b16 %v599
    %v671 = vunpack.c.l.b16 %v600
    %v672 = vunpack.c.l.b16 %v601
    %v673 = vunpack.c.l.b16 %v602
    %v674 = vunpack.c.l.b16 %v603
    %v675 = vunpack.c.l.b16 %v604
    %v676 = vunpack.c.l.b16 %v605
    %v677 = vunpack.c.l.b16 %v606
    %v678 = vunpack.c.l.b16 %v607
    %v679 = vunpack.c.l.b16 %v608
    %v680 = vunpack.c.l.b16 %v609
    %v681 = vunpack.c.l.b16 %v610
    %v682 = vunpack.c.l.b16 %v611
    %v683 = vunpack.c.l.b16 %v612
    %v684 = vunpack.c.l.b16 %v613
    %v685 = vunpack.c.l.b16 %v614
    %v686 = vunpack.c.l.b16 %v615
    %v687 = vunpack.c.l.b16 %v616
    %v688 = vpack.c.b16 %v657, %v656
    %v689 = vpack.c.b16 %v659, %v658
    %v690 = vpack.c.b16 %v661, %v660
    %v691 = vpack.c.b16 %v663, %v662
    %v692 = vpack.c.b16 %v665, %v664
    %v693 = vpack.c.b16 %v667, %v666
    %v694 = vpack.c.b16 %v669, %v668
    %v695 = vpack.c.b16 %v671, %v670
    %v696 = vpack.c.b16 %v673, %v672
    %v697 = vpack.c.b16 %v675, %v674
    %v698 = vpack.c.b16 %v677, %v676
    %v699 = vpack.c.b16 %v679, %v678
    %v700 = vpack.c.b16 %v681, %v680
    %v701 = vpack.c.b16 %v683, %v682
    %v702 = vpack.c.b16 %v685, %v684
    %v703 = vpack.c.b16 %v687, %v686
    %720 = vmatprep.subr.bf16.mxu0 0
    %721 = vmatpush1.bf16.msra.mxu0 %v695
    %722 = vmatprep.subr.bf16.mxu0 0
    %723 = vmatpush1.bf16.msra.mxu0 %v694
    %724 = vmatprep.subr.bf16.mxu0 0
    %725 = vmatpush1.bf16.msra.mxu0 %v693
    %726 = vmatprep.subr.bf16.mxu0 0
    %727 = vmatpush1.bf16.msra.mxu0 %v692
    %728 = vmatprep.subr.bf16.mxu0 0
    %729 = vmatpush1.bf16.msra.mxu0 %v691
    %730 = vmatprep.subr.bf16.mxu0 0
    %731 = vmatpush1.bf16.msra.mxu0 %v690
    %732 = vmatprep.subr.bf16.mxu0 0
    %733 = vmatpush1.bf16.msra.mxu0 %v689
    %734 = vmatprep.subr.bf16.mxu0 0
    %735 = vmatpush1.bf16.msra.mxu0 %v688
    %736 = vmatprep.subr.bf16.mxu0 0
    %737 = vmatpush2.bf16.msra.mxu0 %v703
    %738 = vmatprep.subr.bf16.mxu0 0
    %739 = vmatpush2.bf16.msra.mxu0 %v702
    %740 = vmatprep.subr.bf16.mxu0 0
    %741 = vmatpush2.bf16.msra.mxu0 %v701
    %742 = vmatprep.subr.bf16.mxu0 0
    %743 = vmatpush2.bf16.msra.mxu0 %v700
    %744 = vmatprep.subr.bf16.mxu0 0
    %745 = vmatpush2.bf16.msra.mxu0 %v699
    %746 = vmatprep.subr.bf16.mxu0 0
    %747 = vmatpush2.bf16.msra.mxu0 %v698
    %748 = vmatprep.subr.bf16.mxu0 0
    %749 = vmatpush2.bf16.msra.mxu0 %v697
    %750 = vmatprep.subr.bf16.mxu0 0
    %751 = vmatpush2.bf16.msra.mxu0 %v696
    %752 = vmatprep.mubr.bf16.mxu0 %v584
    %753 = vmatmul.mubr.bf16.gmra.mxu0 %v583
    %v754 = vpop.f32.mrf.mxu0
    %v755 = vadd.f32 %v622, %v754
    %v756 = vpop.f32.mrf.mxu0
    %v757 = vpop.f32.mrf.mxu0
    %v758 = vpop.f32.mrf.mxu0
    %759 = vdwg.mxu0
    %v760 = vmax.f32 %v755, 0.0
    %v761 = vpack.c.bf16 %v760, %v760
    %v762 = vld [vmem:[#allocation11] sm:$0xf]
    %v763 = vld [vmem:[#allocation11 + $0x4] sm:$0xf]
    %v764 = vld [vmem:[#allocation11 + $0x8] sm:$0xf]
    %v765 = vld [vmem:[#allocation11 + $0xc] sm:$0xf]
    %v766 = vld [vmem:[#allocation11 + $0x10] sm:$0xf]
    %v767 = vld [vmem:[#allocation11 + $0x14] sm:$0xf]
    %v768 = vld [vmem:[#allocation11 + $0x18] sm:$0xf]
    %v769 = vld [vmem:[#allocation11 + $0x1c] sm:$0xf]
    %v770 = vld [vmem:[#allocation11 + $0x20] sm:$0xf]
    %v771 = vld [vmem:[#allocation11 + $0x24] sm:$0xf]
    %v772 = vld [vmem:[#allocation11 + $0x28] sm:$0xf]
    %v773 = vld [vmem:[#allocation11 + $0x2c] sm:$0xf]
    %v774 = vld [vmem:[#allocation11 + $0x30] sm:$0xf]
    %v775 = vld [vmem:[#allocation11 + $0x34] sm:$0xf]
    %v776 = vld [vmem:[#allocation11 + $0x38] sm:$0xf]
    %v777 = vld [vmem:[#allocation11 + $0x3c] sm:$0xf]
    %v778 = vld [vmem:[%s10] sm:$0x1]
    %v780 = vlaneseq
    %v781 = vshrl.u32 %v780, 7
    %v782 = vsub.s32 0, %v781
    %v783 = vrot.slane %v778, %v782
    %v801 = vunpack.c.l.b16 %v762
    %v802 = vunpack.c.l.b16 %v763
    %v803 = vunpack.c.l.b16 %v764
    %v804 = vunpack.c.l.b16 %v765
    %v805 = vunpack.c.l.b16 %v766
    %v806 = vunpack.c.l.b16 %v767
    %v807 = vunpack.c.l.b16 %v768
    %v808 = vunpack.c.l.b16 %v769
    %v809 = vunpack.c.l.b16 %v770
    %v810 = vunpack.c.l.b16 %v771
    %v811 = vunpack.c.l.b16 %v772
    %v812 = vunpack.c.l.b16 %v773
    %v813 = vunpack.c.l.b16 %v774
    %v814 = vunpack.c.l.b16 %v775
    %v815 = vunpack.c.l.b16 %v776
    %v816 = vunpack.c.l.b16 %v777
    %v817 = vpack.c.b16 %v802, %v801
    %v818 = vpack.c.b16 %v804, %v803
    %v819 = vpack.c.b16 %v806, %v805
    %v820 = vpack.c.b16 %v808, %v807
    %v821 = vpack.c.b16 %v810, %v809
    %v822 = vpack.c.b16 %v812, %v811
    %v823 = vpack.c.b16 %v814, %v813
    %v824 = vpack.c.b16 %v816, %v815
    %833 = vmatprep.subr.bf16.mxu0 0
    %834 = vmatpush1.bf16.msra.mxu0 %v824
    %835 = vmatprep.subr.bf16.mxu0 0
    %836 = vmatpush1.bf16.msra.mxu0 %v823
    %837 = vmatprep.subr.bf16.mxu0 0
    %838 = vmatpush1.bf16.msra.mxu0 %v822
    %839 = vmatprep.subr.bf16.mxu0 0
    %840 = vmatpush1.bf16.msra.mxu0 %v821
    %841 = vmatprep.subr.bf16.mxu0 0
    %842 = vmatpush1.bf16.msra.mxu0 %v820
    %843 = vmatprep.subr.bf16.mxu0 0
    %844 = vmatpush1.bf16.msra.mxu0 %v819
    %845 = vmatprep.subr.bf16.mxu0 0
    %846 = vmatpush1.bf16.msra.mxu0 %v818
    %847 = vmatprep.subr.bf16.mxu0 0
    %848 = vmatpush1.bf16.msra.mxu0 %v817
    %849 = vmatprep.subr.bf16.mxu0 0
    %850 = vmatpush2.bf16.msra.mxu0 0
    %851 = vmatprep.subr.bf16.mxu0 0
    %852 = vmatpush2.bf16.msra.mxu0 0
    %853 = vmatprep.subr.bf16.mxu0 0
    %854 = vmatpush2.bf16.msra.mxu0 0
    %855 = vmatprep.subr.bf16.mxu0 0
    %856 = vmatpush2.bf16.msra.mxu0 0
    %857 = vmatprep.subr.bf16.mxu0 0
    %858 = vmatpush2.bf16.msra.mxu0 0
    %859 = vmatprep.subr.bf16.mxu0 0
    %860 = vmatpush2.bf16.msra.mxu0 0
    %861 = vmatprep.subr.bf16.mxu0 0
    %862 = vmatpush2.bf16.msra.mxu0 0
    %863 = vmatprep.subr.bf16.mxu0 0
    %864 = vmatpush2.bf16.msra.mxu0 0
    %865 = vmatprep.mubr.bf16.mxu0 0
    %866 = vmatmul.mubr.bf16.gmra.mxu0 %v761
    %v867 = vpop.f32.mrf.mxu0
    %v868 = vadd.f32 %v783, %v867
    %v869 = vpop.f32.mrf.mxu0
    %v870 = vpop.f32.mrf.mxu0
    %v871 = vpop.f32.mrf.mxu0
    %872 = vdwg.mxu0
    %vm873 = vcmask 64512
    %874 = vst.msk [vmem:[#allocation13] sm:$0xff] %vm873, %v868
    // Predicated region
    $region70: #{tpu_custom_call.1} parent=1 // pred_check
      _
    $region71: #{tpu_custom_call.1} parent=1 // pred_check_branch
      %876 = sbr.rel (0) target = $region73
    $region72: #{tpu_custom_call.1} parent=1 // pred_region
      %s878 = ssub.s32 128, 128
      %879 = vsyncadd [#allocation4], %s878
      %s881 = sshll.u32 [#allocation13], 4
      %s882 = int_to_ptr.vmem [resolvable:$true] %s881
      %884 = dma.vmem_to_hbm [thread:$0]  %s882, 128, %s11, [#allocation4]
    $region73: #{tpu_custom_call.1} parent=1 // pred_fallthru
      _
    // Predicated region
    $region74: #{tpu_custom_call.1} parent=1 // pred_check
      _
    $region75: #{tpu_custom_call.1} parent=1 // pred_check_branch
      %886 = sbr.rel (0) target = $region77
    $region76: #{tpu_custom_call.1} parent=1 // pred_region
      %887 = dma.done [#allocation4], 128
    $region77: #{tpu_custom_call.1} parent=1 // pred_fallthru
      _
    %888 = vsyncpa [#allocation3], 1
    %889 = vsyncpa [#allocation6], 1
    %890 = vsyncpa [#allocation9], 1
    %891 = vsyncpa [#allocation12], 1
    %892 = vsyncpa [#allocation4], 1

</llo_original>
